<compile_context>
chip_gen: v7x
topology: tpu7x:2x2x1
jax: 0.10.0
libtpu: 0.0.40
codegen_flags: <defaults>
</compile_context>

<pallas_src>
import math
import jax
import jax.numpy as jnp
from jax.experimental import pallas as pl
from jax.experimental.pallas import tpu as pltpu


# ----------------------------------------------------------------------------
# Parameter init (matches torch: xavier_uniform_ weights, zero bias)
# ----------------------------------------------------------------------------
def _xavier_uniform(key, fan_in, fan_out, dtype=jnp.float32):
    bound = math.sqrt(6.0 / (fan_in + fan_out))
    return jax.random.uniform(key, (fan_in, fan_out), dtype=dtype,
                              minval=-bound, maxval=bound)


def init_discriminator_params(key, input_dim, hidden_dim):
    """Returns list of (W, b) with W: (in, out), b: (1, out), all float32."""
    dims = [input_dim] + list(hidden_dim) + [1]
    params = []
    for i in range(len(dims) - 1):
        key, sub = jax.random.split(key)
        w = _xavier_uniform(sub, dims[i], dims[i + 1])
        b = jnp.zeros((1, dims[i + 1]), dtype=jnp.float32)
        params.append((w, b))
    return params


def _round_up(x, m):
    return (x + m - 1) // m * m


# ----------------------------------------------------------------------------
# Kernel
# ----------------------------------------------------------------------------
def _make_mlp_kernel(num_layers):
    def kernel(*refs):
        # refs = (x_ref, w0, b0, ..., w_{L-1}, b_{L-1}, o_ref)
        # hidden weights are bf16; biases f32; last weight pre-transposed (1, F) f32.
        x_ref = refs[0]
        o_ref = refs[-1]
        h = x_ref[...]                                        # (TB, D_in) bf16
        for l in range(num_layers - 1):
            w_ref = refs[1 + 2 * l]                           # (in, out) bf16
            b_ref = refs[2 + 2 * l]                           # (1, out)  f32
            # bf16 x bf16 MXU matmul with f32 accumulation.
            h = jnp.dot(h.astype(w_ref.dtype), w_ref[...],
                        preferred_element_type=jnp.float32)
            h = jnp.maximum(h + b_ref[...], 0.0)              # bias + ReLU, f32 VPU
        # Final layer: (TB, F) -> (TB, 1) via broadcast multiply + lane reduce
        # (VPU + XLU) instead of an N=1 MXU pass that is all padding.
        wl_ref = refs[1 + 2 * (num_layers - 1)]               # (1, F) f32
        bl_ref = refs[2 + 2 * (num_layers - 1)]               # (1, 1) f32
        logit = jnp.sum(h * wl_ref[...], axis=-1, keepdims=True) + bl_ref[...]
        o_ref[...] = jax.nn.sigmoid(logit).astype(o_ref.dtype)
    return kernel


# ----------------------------------------------------------------------------
# Wrapper
# ----------------------------------------------------------------------------
_VMEM_BUDGET = 48 * 2**20   # conservative: v7x has 64 MiB physical VMEM per TC
_MIN_TILE = 128             # keep MXU M-dim fed once the batch is large enough
_MIN_STEPS = 8              # >= 2 TensorCores (v7x megacore) x ~4 steps each


def discriminator_forward(x, params, *, batch_tile=1024):
    """x: (B, input_dim) float32 -> (B, 1) float32 (sigmoid probabilities)."""
    B, D_in = x.shape
    num_layers = len(params)
    widest = max([D_in] + [int(w.shape[1]) for w, _ in params])

    # ---- tile selection -----------------------------------------------------
    # Large tile (amortizes ~0.35us/step), multiple of 16 (bf16 sublane packing),
    # capped so big batches keep >= _MIN_STEPS grid steps (megacore + overlap).
    tile = _round_up(min(B, batch_tile), 16)
    steps_tile = max(_MIN_TILE, _round_up(pl.cdiv(B, _MIN_STEPS), 16))
    tile = min(tile, steps_tile)

    # Weight/bias bytes (hidden weights bf16, last weight + all biases f32).
    w_bytes = 0
    for l, (w, b) in enumerate(params):
        w_bytes += int(w.size) * (2 if l < num_layers - 1 else 4)
        w_bytes += int(b.size) * 4

    def footprint(t):
        x_stream = 2 * t * D_in * 2          # bf16 x, double-buffered
        out_stream = 2 * t * 4               # (t, 1) f32 output, double-buffered
        acts = 2 * t * widest * 4            # f32 activation temporaries
        return x_stream + out_stream + acts + 2 * w_bytes  # worst case: 2x weights

    while footprint(tile) > _VMEM_BUDGET and tile > 16:
        tile = max(16, _round_up(tile // 2, 16))

    vmem_limit = int(max(32 * 2**20,
                         min(56 * 2**20, footprint(tile) * 2 + 4 * 2**20)))

    B_pad = _round_up(B, tile)
    grid = (B_pad // tile,)

    # ---- operand preparation ------------------------------------------------
    x_in = x.astype(jnp.bfloat16)
    if B_pad != B:
        x_in = jnp.pad(x_in, ((0, B_pad - B), (0, 0)))

    flat_params = []
    for l, (w, b) in enumerate(params):
        if l == num_layers - 1:
            # Final layer stays f32 and pre-transposed: used in a VPU reduce.
            flat_params.append(w.T.astype(jnp.float32))       # (1, h_last)
        else:
            flat_params.append(w.astype(jnp.bfloat16))        # (in, out)
        flat_params.append(b.astype(jnp.float32))             # (1, out)

    # Advisory cost estimate (helps XLA schedule around the custom call).
    flops = 2 * B_pad * sum(int(w.shape[0]) * int(w.shape[1]) for w, _ in params)
    bytes_accessed = (B_pad * D_in * 2 + B_pad * 4 +
                      sum(int(p.size) * p.dtype.itemsize for p in flat_params))
    cost = pl.CostEstimate(flops=flops, transcendentals=B_pad,
                           bytes_accessed=bytes_accessed)

    # ---- pallas_call builder ------------------------------------------------
    def build_call(single_buffer_weights):
        in_specs = [pl.BlockSpec((tile, D_in), lambda i: (i, 0))]
        for p in flat_params:
            if single_buffer_weights:
                # Constant index_map -> resident; single buffer saves VMEM.
                spec = pl.BlockSpec(p.shape, lambda i: (0, 0),
                                    pipeline_mode=pl.Buffered(1))
            else:
                spec = pl.BlockSpec(p.shape, lambda i: (0, 0))
            in_specs.append(spec)
        out_spec = pl.BlockSpec((tile, 1), lambda i: (i, 0))
        return pl.pallas_call(
            _make_mlp_kernel(num_layers),
            out_shape=jax.ShapeDtypeStruct((B_pad, 1), jnp.float32),
            grid_spec=pltpu.PrefetchScalarGridSpec(
                num_scalar_prefetch=0,
                grid=grid,
                in_specs=in_specs,
                out_specs=out_spec,
            ),
            compiler_params=pltpu.CompilerParams(
                dimension_semantics=("parallel",),
                vmem_limit_bytes=vmem_limit,
            ),
            cost_estimate=cost,
        )

    try:
        out = build_call(True)(x_in, *flat_params)
    except Exception:
        # Fall back to default double-buffered weight specs if this jax
        # version rejects Buffered(1); costs only a little extra VMEM.
        out = build_call(False)(x_in, *flat_params)
    return out[:B]


# ----------------------------------------------------------------------------
# Plain-JAX reference for correctness checking
# ----------------------------------------------------------------------------
def discriminator_ref(x, params):
    h = x
    for l, (w, b) in enumerate(params):
        h = h @ w + b
        if l < len(params) - 1:
            h = jnp.maximum(h, 0.0)
        else:
            h = jax.nn.sigmoid(h)
    return h


if __name__ == "__main__":
    key = jax.random.PRNGKey(0)
    batch = 8
    input_dim = 32
    hidden_dim = [64, 32]

    k_x, k_p = jax.random.split(key)
    x = jax.random.normal(k_x, (batch, input_dim), dtype=jnp.float32)
    params = init_discriminator_params(k_p, input_dim, hidden_dim)

    out = jax.block_until_ready(discriminator_forward(x, params))
    ref = discriminator_ref(x, params)
    assert out.shape == (batch, 1)
    # bf16 streaming of x / hidden weights -> tolerance relaxed vs f32 reference.
    assert jnp.max(jnp.abs(out - ref)) < 2e-2, "mismatch vs reference"

    # Larger, non-tile-multiple batch: exercises the zero-padding path and a
    # multi-step grid (>= _MIN_STEPS steps -> megacore sharding on v7x).
    k_x2, _ = jax.random.split(k_x)
    x_big = jax.random.normal(k_x2, (1000, input_dim), dtype=jnp.float32)
    out_big = jax.block_until_ready(discriminator_forward(x_big, params))
    ref_big = discriminator_ref(x_big, params)
    assert out_big.shape == (1000, 1)
    assert jnp.max(jnp.abs(out_big - ref_big)) < 2e-2, "mismatch (big)"

    print("KERNEL_OK")
</pallas_src>

<mosaic_0001>
module attributes {stable_mosaic.version = 11 : i64} {
  func.func @kernel(%arg0: i32, %arg1: memref<16x32xbf16, #tpu.memory_space<vmem>>, %arg2: memref<32x64xbf16, #tpu.memory_space<vmem>>, %arg3: memref<1x64xf32, #tpu.memory_space<vmem>>, %arg4: memref<64x32xbf16, #tpu.memory_space<vmem>>, %arg5: memref<1x32xf32, #tpu.memory_space<vmem>>, %arg6: memref<1x32xf32, #tpu.memory_space<vmem>>, %arg7: memref<1x1xf32, #tpu.memory_space<vmem>>, %arg8: memref<16x1xf32, #tpu.memory_space<vmem>>) attributes {dimension_semantics = [#tpu.dimension_semantics<parallel>], iteration_bounds = array<i64: 1>, scalar_prefetch = 0 : i64, scratch_operands = 0 : i64, tpu.core_type = #tpu.core_type<tc>, window_params = [{transform_indices = @transform_0, window_bounds = array<i64: 16, 32>}, {pipeline_mode = #tpu.pipeline_mode<synchronous>, transform_indices = @transform_1, window_bounds = array<i64: 32, 64>}, {pipeline_mode = #tpu.pipeline_mode<synchronous>, transform_indices = @transform_2, window_bounds = array<i64: 1, 64>}, {pipeline_mode = #tpu.pipeline_mode<synchronous>, transform_indices = @transform_3, window_bounds = array<i64: 64, 32>}, {pipeline_mode = #tpu.pipeline_mode<synchronous>, transform_indices = @transform_4, window_bounds = array<i64: 1, 32>}, {pipeline_mode = #tpu.pipeline_mode<synchronous>, transform_indices = @transform_5, window_bounds = array<i64: 1, 32>}, {pipeline_mode = #tpu.pipeline_mode<synchronous>, transform_indices = @transform_6, window_bounds = array<i64: 1, 1>}, {transform_indices = @transform_7, window_bounds = array<i64: 16, 1>}]} {
    %c0 = arith.constant 0 : index
    %c0_0 = arith.constant 0 : index
    %0 = vector.load %arg1[%c0, %c0_0] : memref<16x32xbf16, #tpu.memory_space<vmem>>, vector<16x32xbf16>
    %c0_1 = arith.constant 0 : index
    %c0_2 = arith.constant 0 : index
    %1 = vector.load %arg2[%c0_1, %c0_2] : memref<32x64xbf16, #tpu.memory_space<vmem>>, vector<32x64xbf16>
    %cst = arith.constant dense<0.000000e+00> : vector<16x64xf32>
    %2 = tpu.matmul %0, %1, %cst {dimension_numbers = #tpu.dot_dimension_numbers<[1], [0], [0], [1], [0, 0, 1, 1], [], []>} : vector<16x32xbf16>, vector<32x64xbf16>, vector<16x64xf32> -> vector<16x64xf32>
    %c0_3 = arith.constant 0 : index
    %c0_4 = arith.constant 0 : index
    %3 = vector.load %arg3[%c0_3, %c0_4] : memref<1x64xf32, #tpu.memory_space<vmem>>, vector<1x64xf32>
    %4 = vector.broadcast %3 : vector<1x64xf32> to vector<16x64xf32>
    %5 = arith.addf %2, %4 : vector<16x64xf32>
    %cst_5 = arith.constant 0.000000e+00 : f32
    %6 = vector.broadcast %cst_5 : f32 to vector<16x64xf32>
    %7 = arith.maximumf %5, %6 : vector<16x64xf32>
    %8 = arith.truncf %7 : vector<16x64xf32> to vector<16x64xbf16>
    %c0_6 = arith.constant 0 : index
    %c0_7 = arith.constant 0 : index
    %9 = vector.load %arg4[%c0_6, %c0_7] : memref<64x32xbf16, #tpu.memory_space<vmem>>, vector<64x32xbf16>
    %cst_8 = arith.constant dense<0.000000e+00> : vector<16x32xf32>
    %10 = tpu.matmul %8, %9, %cst_8 {dimension_numbers = #tpu.dot_dimension_numbers<[1], [0], [0], [1], [0, 0, 1, 1], [], []>} : vector<16x64xbf16>, vector<64x32xbf16>, vector<16x32xf32> -> vector<16x32xf32>
    %c0_9 = arith.constant 0 : index
    %c0_10 = arith.constant 0 : index
    %11 = vector.load %arg5[%c0_9, %c0_10] : memref<1x32xf32, #tpu.memory_space<vmem>>, vector<1x32xf32>
    %12 = vector.broadcast %11 : vector<1x32xf32> to vector<16x32xf32>
    %13 = arith.addf %10, %12 : vector<16x32xf32>
    %cst_11 = arith.constant 0.000000e+00 : f32
    %14 = vector.broadcast %cst_11 : f32 to vector<16x32xf32>
    %15 = arith.maximumf %13, %14 : vector<16x32xf32>
    %c0_12 = arith.constant 0 : index
    %c0_13 = arith.constant 0 : index
    %16 = vector.load %arg6[%c0_12, %c0_13] : memref<1x32xf32, #tpu.memory_space<vmem>>, vector<1x32xf32>
    %17 = vector.broadcast %16 : vector<1x32xf32> to vector<16x32xf32>
    %18 = arith.mulf %15, %17 : vector<16x32xf32>
    %cst_14 = arith.constant dense<0.000000e+00> : vector<16xf32>
    %19 = vector.multi_reduction <add>, %18, %cst_14 [1] : vector<16x32xf32> to vector<16xf32>
    %20 = vector.shape_cast %19 : vector<16xf32> to vector<16x1xf32>
    %c0_15 = arith.constant 0 : index
    %c0_16 = arith.constant 0 : index
    %21 = vector.load %arg7[%c0_15, %c0_16] : memref<1x1xf32, #tpu.memory_space<vmem>>, vector<1x1xf32>
    %22 = vector.broadcast %21 : vector<1x1xf32> to vector<16x1xf32>
    %23 = arith.addf %20, %22 : vector<16x1xf32>
    %24 = arith.negf %23 : vector<16x1xf32>
    %25 = math.exp %24 : vector<16x1xf32>
    %cst_17 = arith.constant 1.000000e+00 : f32
    %26 = vector.broadcast %cst_17 : f32 to vector<16x1xf32>
    %27 = arith.addf %26, %25 : vector<16x1xf32>
    %28 = arith.divf %26, %27 : vector<16x1xf32>
    %c0_18 = arith.constant 0 : index
    %c0_19 = arith.constant 0 : index
    %29 = vector.load %arg8[%c0_18, %c0_19] : memref<16x1xf32, #tpu.memory_space<vmem>>, vector<16x1xf32>
    tpu.vector_store %arg8[%c0_18, %c0_19], %28 {strides = array<i32>} : memref<16x1xf32, #tpu.memory_space<vmem>>, vector<16x1xf32>,
    return
  }
  func.func @transform_0(%arg0: i32) -> (i32, i32) {
    %c0_i32 = arith.constant 0 : i32
    %c0_i32_0 = arith.constant 0 : i32
    return %arg0, %c0_i32 : i32, i32
  }
  func.func @transform_1(%arg0: i32) -> (i32, i32) {
    %c0_i32 = arith.constant 0 : i32
    %c0_i32_0 = arith.constant 0 : i32
    %c0_i32_1 = arith.constant 0 : i32
    return %c0_i32, %c0_i32_0 : i32, i32
  }
  func.func @transform_2(%arg0: i32) -> (i32, i32) {
    %c0_i32 = arith.constant 0 : i32
    %c0_i32_0 = arith.constant 0 : i32
    %c0_i32_1 = arith.constant 0 : i32
    return %c0_i32, %c0_i32_0 : i32, i32
  }
  func.func @transform_3(%arg0: i32) -> (i32, i32) {
    %c0_i32 = arith.constant 0 : i32
    %c0_i32_0 = arith.constant 0 : i32
    %c0_i32_1 = arith.constant 0 : i32
    return %c0_i32, %c0_i32_0 : i32, i32
  }
  func.func @transform_4(%arg0: i32) -> (i32, i32) {
    %c0_i32 = arith.constant 0 : i32
    %c0_i32_0 = arith.constant 0 : i32
    %c0_i32_1 = arith.constant 0 : i32
    return %c0_i32, %c0_i32_0 : i32, i32
  }
  func.func @transform_5(%arg0: i32) -> (i32, i32) {
    %c0_i32 = arith.constant 0 : i32
    %c0_i32_0 = arith.constant 0 : i32
    %c0_i32_1 = arith.constant 0 : i32
    return %c0_i32, %c0_i32_0 : i32, i32
  }
  func.func @transform_6(%arg0: i32) -> (i32, i32) {
    %c0_i32 = arith.constant 0 : i32
    %c0_i32_0 = arith.constant 0 : i32
    %c0_i32_1 = arith.constant 0 : i32
    return %c0_i32, %c0_i32_0 : i32, i32
  }
  func.func @transform_7(%arg0: i32) -> (i32, i32) {
    %c0_i32 = arith.constant 0 : i32
    %c0_i32_0 = arith.constant 0 : i32
    return %arg0, %c0_i32 : i32, i32
  }
}

module attributes {stable_mosaic.version = 11 : i64} {
  func.func @kernel(%arg0: i32, %arg1: memref<16x32xbf16, #tpu.memory_space<vmem>>, %arg2: memref<32x64xbf16, #tpu.memory_space<vmem>>, %arg3: memref<1x64xf32, #tpu.memory_space<vmem>>, %arg4: memref<64x32xbf16, #tpu.memory_space<vmem>>, %arg5: memref<1x32xf32, #tpu.memory_space<vmem>>, %arg6: memref<1x32xf32, #tpu.memory_space<vmem>>, %arg7: memref<1x1xf32, #tpu.memory_space<vmem>>, %arg8: memref<16x1xf32, #tpu.memory_space<vmem>>) attributes {dimension_semantics = [#tpu.dimension_semantics<parallel>], iteration_bounds = array<i64: 1>, scalar_prefetch = 0 : i64, scratch_operands = 0 : i64, tpu.core_type = #tpu.core_type<tc>, window_params = [{transform_indices = @transform_0, window_bounds = array<i64: 16, 32>}, {pipeline_mode = #tpu.pipeline_mode<synchronous>, transform_indices = @transform_1, window_bounds = array<i64: 32, 64>}, {pipeline_mode = #tpu.pipeline_mode<synchronous>, transform_indices = @transform_2, window_bounds = array<i64: 1, 64>}, {pipeline_mode = #tpu.pipeline_mode<synchronous>, transform_indices = @transform_3, window_bounds = array<i64: 64, 32>}, {pipeline_mode = #tpu.pipeline_mode<synchronous>, transform_indices = @transform_4, window_bounds = array<i64: 1, 32>}, {pipeline_mode = #tpu.pipeline_mode<synchronous>, transform_indices = @transform_5, window_bounds = array<i64: 1, 32>}, {pipeline_mode = #tpu.pipeline_mode<synchronous>, transform_indices = @transform_6, window_bounds = array<i64: 1, 1>}, {transform_indices = @transform_7, window_bounds = array<i64: 16, 1>}]} {
    %c0 = arith.constant 0 : index
    %c0_0 = arith.constant 0 : index
    %0 = vector.load %arg1[%c0, %c0_0] : memref<16x32xbf16, #tpu.memory_space<vmem>>, vector<16x32xbf16>
    %c0_1 = arith.constant 0 : index
    %c0_2 = arith.constant 0 : index
    %1 = vector.load %arg2[%c0_1, %c0_2] : memref<32x64xbf16, #tpu.memory_space<vmem>>, vector<32x64xbf16>
    %cst = arith.constant dense<0.000000e+00> : vector<16x64xf32>
    %2 = tpu.matmul %0, %1, %cst {dimension_numbers = #tpu.dot_dimension_numbers<[1], [0], [0], [1], [0, 0, 1, 1], [], []>} : vector<16x32xbf16>, vector<32x64xbf16>, vector<16x64xf32> -> vector<16x64xf32>
    %c0_3 = arith.constant 0 : index
    %c0_4 = arith.constant 0 : index
    %3 = vector.load %arg3[%c0_3, %c0_4] : memref<1x64xf32, #tpu.memory_space<vmem>>, vector<1x64xf32>
    %4 = vector.broadcast %3 : vector<1x64xf32> to vector<16x64xf32>
    %5 = arith.addf %2, %4 : vector<16x64xf32>
    %cst_5 = arith.constant 0.000000e+00 : f32
    %6 = vector.broadcast %cst_5 : f32 to vector<16x64xf32>
    %7 = arith.maximumf %5, %6 : vector<16x64xf32>
    %8 = arith.truncf %7 : vector<16x64xf32> to vector<16x64xbf16>
    %c0_6 = arith.constant 0 : index
    %c0_7 = arith.constant 0 : index
    %9 = vector.load %arg4[%c0_6, %c0_7] : memref<64x32xbf16, #tpu.memory_space<vmem>>, vector<64x32xbf16>
    %cst_8 = arith.constant dense<0.000000e+00> : vector<16x32xf32>
    %10 = tpu.matmul %8, %9, %cst_8 {dimension_numbers = #tpu.dot_dimension_numbers<[1], [0], [0], [1], [0, 0, 1, 1], [], []>} : vector<16x64xbf16>, vector<64x32xbf16>, vector<16x32xf32> -> vector<16x32xf32>
    %c0_9 = arith.constant 0 : index
    %c0_10 = arith.constant 0 : index
    %11 = vector.load %arg5[%c0_9, %c0_10] : memref<1x32xf32, #tpu.memory_space<vmem>>, vector<1x32xf32>
    %12 = vector.broadcast %11 : vector<1x32xf32> to vector<16x32xf32>
    %13 = arith.addf %10, %12 : vector<16x32xf32>
    %cst_11 = arith.constant 0.000000e+00 : f32
    %14 = vector.broadcast %cst_11 : f32 to vector<16x32xf32>
    %15 = arith.maximumf %13, %14 : vector<16x32xf32>
    %c0_12 = arith.constant 0 : index
    %c0_13 = arith.constant 0 : index
    %16 = vector.load %arg6[%c0_12, %c0_13] : memref<1x32xf32, #tpu.memory_space<vmem>>, vector<1x32xf32>
    %17 = vector.broadcast %16 : vector<1x32xf32> to vector<16x32xf32>
    %18 = arith.mulf %15, %17 : vector<16x32xf32>
    %cst_14 = arith.constant dense<0.000000e+00> : vector<16xf32>
    %19 = vector.multi_reduction <add>, %18, %cst_14 [1] : vector<16x32xf32> to vector<16xf32>
    %20 = vector.shape_cast %19 : vector<16xf32> to vector<16x1xf32>
    %c0_15 = arith.constant 0 : index
    %c0_16 = arith.constant 0 : index
    %21 = vector.load %arg7[%c0_15, %c0_16] : memref<1x1xf32, #tpu.memory_space<vmem>>, vector<1x1xf32>
    %22 = vector.broadcast %21 : vector<1x1xf32> to vector<16x1xf32>
    %23 = arith.addf %20, %22 : vector<16x1xf32>
    %24 = arith.negf %23 : vector<16x1xf32>
    %25 = math.exp %24 : vector<16x1xf32>
    %cst_17 = arith.constant 1.000000e+00 : f32
    %26 = vector.broadcast %cst_17 : f32 to vector<16x1xf32>
    %27 = arith.addf %26, %25 : vector<16x1xf32>
    %28 = arith.divf %26, %27 : vector<16x1xf32>
    %c0_18 = arith.constant 0 : index
    %c0_19 = arith.constant 0 : index
    %29 = vector.load %arg8[%c0_18, %c0_19] : memref<16x1xf32, #tpu.memory_space<vmem>>, vector<16x1xf32>
    tpu.vector_store %arg8[%c0_18, %c0_19], %28 {strides = array<i32>} : memref<16x1xf32, #tpu.memory_space<vmem>>, vector<16x1xf32>,
    return
  }
  func.func @transform_0(%arg0: i32) -> (i32, i32) {
    %c0_i32 = arith.constant 0 : i32
    %c0_i32_0 = arith.constant 0 : i32
    return %arg0, %c0_i32 : i32, i32
  }
  func.func @transform_1(%arg0: i32) -> (i32, i32) {
    %c0_i32 = arith.constant 0 : i32
    %c0_i32_0 = arith.constant 0 : i32
    %c0_i32_1 = arith.constant 0 : i32
    return %c0_i32, %c0_i32_0 : i32, i32
  }
  func.func @transform_2(%arg0: i32) -> (i32, i32) {
    %c0_i32 = arith.constant 0 : i32
    %c0_i32_0 = arith.constant 0 : i32
    %c0_i32_1 = arith.constant 0 : i32
    return %c0_i32, %c0_i32_0 : i32, i32
  }
  func.func @transform_3(%arg0: i32) -> (i32, i32) {
    %c0_i32 = arith.constant 0 : i32
    %c0_i32_0 = arith.constant 0 : i32
    %c0_i32_1 = arith.constant 0 : i32
    return %c0_i32, %c0_i32_0 : i32, i32
  }
  func.func @transform_4(%arg0: i32) -> (i32, i32) {
    %c0_i32 = arith.constant 0 : i32
    %c0_i32_0 = arith.constant 0 : i32
    %c0_i32_1 = arith.constant 0 : i32
    return %c0_i32, %c0_i32_0 : i32, i32
  }
  func.func @transform_5(%arg0: i32) -> (i32, i32) {
    %c0_i32 = arith.constant 0 : i32
    %c0_i32_0 = arith.constant 0 : i32
    %c0_i32_1 = arith.constant 0 : i32
    return %c0_i32, %c0_i32_0 : i32, i32
  }
  func.func @transform_6(%arg0: i32) -> (i32, i32) {
    %c0_i32 = arith.constant 0 : i32
    %c0_i32_0 = arith.constant 0 : i32
    %c0_i32_1 = arith.constant 0 : i32
    return %c0_i32, %c0_i32_0 : i32, i32
  }
  func.func @transform_7(%arg0: i32) -> (i32, i32) {
    %c0_i32 = arith.constant 0 : i32
    %c0_i32_0 = arith.constant 0 : i32
    return %arg0, %c0_i32 : i32, i32
  }
}

</mosaic_0001>

<llo_original>
// kernel: tpu_custom_call.1
$region0: #{tpu_custom_call.1}
  #allocation0 [shape = 'u32[]', space=smem, size = 0x4, offset = 0x4, fixed_abs, tag = 'smem constant byte address 0x4 - core index']
  #allocation1 [shape = 'u32[144,128]{1,0:T(1,128)}', space=vmem, size = 0x12000, scoped, tag = 'internal scratch']
  #allocation2 [shape = 'f32[1,1]{1,0:T(1,128)S(1)}', space=vmem, size = 0x200, scoped, tag = 'scoped memory for tpu_custom_call.1']
  %s0 = inlined_call_operand.vmem [shape: bf16[16,32], index: 0, kind: input, shape index: {}]
  %s1 = inlined_call_operand.vmem [shape: bf16[32,64], index: 1, kind: input, shape index: {}]
  %s2 = inlined_call_operand.vmem [shape: f32[1,64], index: 2, kind: input, shape index: {}]
  %s3 = inlined_call_operand.vmem [shape: bf16[64,32], index: 3, kind: input, shape index: {}]
  %s4 = inlined_call_operand.vmem [shape: f32[1,32], index: 4, kind: input, shape index: {}]
  %s5 = inlined_call_operand.vmem [shape: f32[1,32], index: 5, kind: input, shape index: {}]
  %s6 = inlined_call_operand.<no memory space> [shape: f32[1,1], index: 6, kind: input, shape index: {}]
  %s7 = inlined_call_operand.vmem [shape: f32[16,1], index: 7, kind: output, shape index: {}]
  %s8 = sld [smem:[#allocation0]]
  $region38: #{tpu_custom_call.1} parent=0
    _
  %s10 = ssub.s32 1, %s8
  %s11 = scalar_select 0, %s10, %s8
  %v12 = vstv %s6
  %13 = vst [vmem:[#allocation2] sm:$0x1] %v12
  // Predicated region
  $region2: #{tpu_custom_call.1} parent=0 // pred_check
    _
  $region3: #{tpu_custom_call.1} parent=0 // pred_check_branch
    %15 = sbr.rel (0) target = $region5
  $region4: #{tpu_custom_call.1} parent=0 // pred_region
    _
  $region5: #{tpu_custom_call.1} parent=0 // pred_fallthru
    _
  // Predicated region
  $region6: #{tpu_custom_call.1} parent=0 // pred_check
    _
  $region7: #{tpu_custom_call.1} parent=0 // pred_check_branch
    %17 = sbr.rel (0) target = $region9
  $region8: #{tpu_custom_call.1} parent=0 // pred_region
    _
  $region9: #{tpu_custom_call.1} parent=0 // pred_fallthru
    _
  // Predicated region
  $region10: #{tpu_custom_call.1} parent=0 // pred_check
    _
  $region11: #{tpu_custom_call.1} parent=0 // pred_check_branch
    %19 = sbr.rel (0) target = $region13
  $region12: #{tpu_custom_call.1} parent=0 // pred_region
    _
  $region13: #{tpu_custom_call.1} parent=0 // pred_fallthru
    _
  // Predicated region
  $region14: #{tpu_custom_call.1} parent=0 // pred_check
    _
  $region15: #{tpu_custom_call.1} parent=0 // pred_check_branch
    %21 = sbr.rel (0) target = $region17
  $region16: #{tpu_custom_call.1} parent=0 // pred_region
    _
  $region17: #{tpu_custom_call.1} parent=0 // pred_fallthru
    _
  // Predicated region
  $region18: #{tpu_custom_call.1} parent=0 // pred_check
    _
  $region19: #{tpu_custom_call.1} parent=0 // pred_check_branch
    %23 = sbr.rel (0) target = $region21
  $region20: #{tpu_custom_call.1} parent=0 // pred_region
    _
  $region21: #{tpu_custom_call.1} parent=0 // pred_fallthru
    _
  // Predicated region
  $region22: #{tpu_custom_call.1} parent=0 // pred_check
    _
  $region23: #{tpu_custom_call.1} parent=0 // pred_check_branch
    %25 = sbr.rel (0) target = $region25
  $region24: #{tpu_custom_call.1} parent=0 // pred_region
    _
  $region25: #{tpu_custom_call.1} parent=0 // pred_fallthru
    _
  // Predicated region
  $region26: #{tpu_custom_call.1} parent=0 // pred_check
    _
  $region27: #{tpu_custom_call.1} parent=0 // pred_check_branch
    %27 = sbr.rel (0) target = $region29
  $region28: #{tpu_custom_call.1} parent=0 // pred_region
    _
  $region29: #{tpu_custom_call.1} parent=0 // pred_fallthru
    _
  %v29 = vld [vmem:[%s0] sm:$0xf]
  %v30 = vld [vmem:[%s0 + $0x4] sm:$0xf]
  %v31 = vld [vmem:[%s1] sm:$0xf]
  %v32 = vld [vmem:[%s1 + $0x4] sm:$0xf]
  %v33 = vld [vmem:[%s1 + $0x8] sm:$0xf]
  %v34 = vld [vmem:[%s1 + $0xc] sm:$0xf]
  %v35 = vld [vmem:[%s2] sm:$0x1]
  %v37 = vlaneseq
  %v38 = vshrl.u32 %v37, 7
  %v39 = vsub.s32 0, %v38
  %v40 = vrot.slane %v35, %v39
  %v44 = vunpack.c.l.b16 %v29
  %v45 = vunpack.c.l.b16 %v30
  %v46 = vpack.c.b16 %v45, %v44
  %v51 = vunpack.c.l.b16 %v31
  %v52 = vunpack.c.l.b16 %v32
  %v53 = vunpack.c.l.b16 %v33
  %v54 = vunpack.c.l.b16 %v34
  %v55 = vpack.c.b16 %v52, %v51
  %v56 = vpack.c.b16 %v54, %v53
  %vm59 = vcmask 261120
  %v61 = vsel %vm59, %v46, 0
  %63 = vmatprep.subr.bf16.mxu0 0
  %64 = vmatpush1.bf16.msra.mxu0 %v55
  %65 = vmatprep.subr.bf16.mxu0 0
  %66 = vmatpush1.bf16.msra.mxu0 %v56
  %67 = vmatprep.subr.bf16.mxu0 0
  %68 = vmatpush1.bf16.msra.mxu0 0
  %69 = vmatprep.subr.bf16.mxu0 0
  %70 = vmatpush1.bf16.msra.mxu0 0
  %71 = vmatprep.subr.bf16.mxu0 0
  %72 = vmatpush1.bf16.msra.mxu0 0
  %73 = vmatprep.subr.bf16.mxu0 0
  %74 = vmatpush1.bf16.msra.mxu0 0
  %75 = vmatprep.subr.bf16.mxu0 0
  %76 = vmatpush1.bf16.msra.mxu0 0
  %77 = vmatprep.subr.bf16.mxu0 0
  %78 = vmatpush1.bf16.msra.mxu0 0
  %79 = vmatprep.subr.bf16.mxu0 0
  %80 = vmatpush1.bf16.msra.mxu0 0
  %81 = vmatprep.subr.bf16.mxu0 0
  %82 = vmatpush1.bf16.msra.mxu0 0
  %83 = vmatprep.subr.bf16.mxu0 0
  %84 = vmatpush1.bf16.msra.mxu0 0
  %85 = vmatprep.subr.bf16.mxu0 0
  %86 = vmatpush1.bf16.msra.mxu0 0
  %87 = vmatprep.subr.bf16.mxu0 0
  %88 = vmatpush1.bf16.msra.mxu0 0
  %89 = vmatprep.subr.bf16.mxu0 0
  %90 = vmatpush1.bf16.msra.mxu0 0
  %91 = vmatprep.subr.bf16.mxu0 0
  %92 = vmatpush1.bf16.msra.mxu0 0
  %93 = vmatprep.subr.bf16.mxu0 0
  %94 = vmatpush1.bf16.msra.mxu0 0
  %95 = vmatprep.mubr.bf16.mxu0 0
  %96 = vmatmul.mubr.bf16.gmra.mrb[0].mxu0 %v61
  %v97 = vpop.f32.mrb[0].mxu0
  %v98 = vadd.f32 %v40, %v97
  %v99 = vpop.f32.mrb[0].mxu0
  %v100 = vpop.f32.mrb[0].mxu0
  %v101 = vadd.f32 %v40, %v100
  %v102 = vpop.f32.mrb[0].mxu0
  %103 = vdwg.mxu0
  %v104 = vmax.f32 %v98, 0.0
  %v105 = vmax.f32 %v101, 0.0
  %v106 = vpack.c.bf16 %v105, %v104
  %v107 = vld [vmem:[%s3] sm:$0xf]
  %v108 = vld [vmem:[%s3 + $0x4] sm:$0xf]
  %v109 = vld [vmem:[%s3 + $0x8] sm:$0xf]
  %v110 = vld [vmem:[%s3 + $0xc] sm:$0xf]
  %v111 = vld [vmem:[%s3 + $0x10] sm:$0xf]
  %v112 = vld [vmem:[%s3 + $0x14] sm:$0xf]
  %v113 = vld [vmem:[%s3 + $0x18] sm:$0xf]
  %v114 = vld [vmem:[%s3 + $0x1c] sm:$0xf]
  %v115 = vld [vmem:[%s4] sm:$0x1]
  %v117 = vlaneseq
  %v118 = vshrl.u32 %v117, 7
  %v119 = vsub.s32 0, %v118
  %v120 = vrot.slane %v115, %v119
  %v130 = vunpack.c.l.b16 %v107
  %v131 = vunpack.c.l.b16 %v108
  %v132 = vunpack.c.l.b16 %v109
  %v133 = vunpack.c.l.b16 %v110
  %v134 = vunpack.c.l.b16 %v111
  %v135 = vunpack.c.l.b16 %v112
  %v136 = vunpack.c.l.b16 %v113
  %v137 = vunpack.c.l.b16 %v114
  %v138 = vpack.c.b16 %v131, %v130
  %v139 = vpack.c.b16 %v133, %v132
  %v140 = vpack.c.b16 %v135, %v134
  %v141 = vpack.c.b16 %v137, %v136
  %vm146 = vcmask 523264
  %v148 = vsel %vm146, %v106, 0
  %150 = vmatprep.subr.bf16.mxu0 0
  %151 = vmatpush1.bf16.msra.mxu0 %v138
  %152 = vmatprep.subr.bf16.mxu0 0
  %153 = vmatpush1.bf16.msra.mxu0 %v139
  %154 = vmatprep.subr.bf16.mxu0 0
  %155 = vmatpush1.bf16.msra.mxu0 %v140
  %156 = vmatprep.subr.bf16.mxu0 0
  %157 = vmatpush1.bf16.msra.mxu0 %v141
  %158 = vmatprep.subr.bf16.mxu0 0
  %159 = vmatpush1.bf16.msra.mxu0 0
  %160 = vmatprep.subr.bf16.mxu0 0
  %161 = vmatpush1.bf16.msra.mxu0 0
  %162 = vmatprep.subr.bf16.mxu0 0
  %163 = vmatpush1.bf16.msra.mxu0 0
  %164 = vmatprep.subr.bf16.mxu0 0
  %165 = vmatpush1.bf16.msra.mxu0 0
  %166 = vmatprep.subr.bf16.mxu0 0
  %167 = vmatpush1.bf16.msra.mxu0 0
  %168 = vmatprep.subr.bf16.mxu0 0
  %169 = vmatpush1.bf16.msra.mxu0 0
  %170 = vmatprep.subr.bf16.mxu0 0
  %171 = vmatpush1.bf16.msra.mxu0 0
  %172 = vmatprep.subr.bf16.mxu0 0
  %173 = vmatpush1.bf16.msra.mxu0 0
  %174 = vmatprep.subr.bf16.mxu0 0
  %175 = vmatpush1.bf16.msra.mxu0 0
  %176 = vmatprep.subr.bf16.mxu0 0
  %177 = vmatpush1.bf16.msra.mxu0 0
  %178 = vmatprep.subr.bf16.mxu0 0
  %179 = vmatpush1.bf16.msra.mxu0 0
  %180 = vmatprep.subr.bf16.mxu0 0
  %181 = vmatpush1.bf16.msra.mxu0 0
  %182 = vmatprep.mubr.bf16.mxu0 0
  %183 = vmatmul.mubr.bf16.gmra.mrb[0].mxu0 %v148
  %v184 = vpop.f32.mrb[0].mxu0
  %v185 = vadd.f32 %v120, %v184
  %v186 = vpop.f32.mrb[0].mxu0
  %v187 = vpop.f32.mrb[0].mxu0
  %v188 = vadd.f32 %v120, %v187
  %v189 = vpop.f32.mrb[0].mxu0
  %190 = vdwg.mxu0
  %v191 = vmax.f32 %v185, 0.0
  %v192 = vmax.f32 %v188, 0.0
  %v193 = vld [vmem:[%s5] sm:$0x1]
  %v195 = vlaneseq
  %v196 = vshrl.u32 %v195, 7
  %v197 = vsub.s32 0, %v196
  %v198 = vrot.slane %v193, %v197
  %v200 = vmul.f32 %v191, %v198
  %v201 = vmul.f32 %v192, %v198
  %v202 = vsel %vm59, %v200, 0.0
  %203 = vadd.xlane.f32.xlu0 %v202
  %v204 = vpop.xlane.xlu0 %203
  %v205 = vsel %vm59, %v201, 0.0
  %206 = vadd.xlane.f32.xlu0 %v205
  %v207 = vpop.xlane.xlu0 %206
  %v208 = vld [vmem:[#allocation2] sm:$0x1]
  %v210 = vlaneseq
  %v211 = vshrl.u32 %v210, 7
  %v212 = vsub.s32 0, %v211
  %v213 = vrot.slane %v208, %v212
  %v215 = vadd.f32 %v204, %v213
  %v216 = vadd.f32 %v207, %v213
  %v217 = vxor.u32 %v215, 2147483648
  %v218 = vxor.u32 %v216, 2147483648
  %v219 = vmul.f32 %v217, 1.442695
  %v220 = vpow.pop %v219
  %v221 = vmul.f32 %v218, 1.442695
  %v222 = vpow.pop %v221
  %v223 = vadd.f32 %v220, 1.0
  %v224 = vadd.f32 %v222, 1.0
  %v225 = vrcp.pop %v223
  %v226 = vmul.f32 1.0, %v225
  %v227 = vrcp.pop %v224
  %v228 = vmul.f32 1.0, %v227
  %vm229 = vcmask 7168
  %230 = vst.msk [vmem:[%s7] sm:$0xff] %vm229, %v226
  %231 = vst.msk [vmem:[%s7 + $0x8] sm:$0xff] %vm229, %v228
  // Predicated region
  $region30: #{tpu_custom_call.1} parent=0 // pred_check
    _
  $region31: #{tpu_custom_call.1} parent=0 // pred_check_branch
    %233 = sbr.rel (0) target = $region33
  $region32: #{tpu_custom_call.1} parent=0 // pred_region
    _
  $region33: #{tpu_custom_call.1} parent=0 // pred_fallthru
    _
  // Predicated region
  $region34: #{tpu_custom_call.1} parent=0 // pred_check
    _
  $region35: #{tpu_custom_call.1} parent=0 // pred_check_branch
    %235 = sbr.rel (0) target = $region37
  $region36: #{tpu_custom_call.1} parent=0 // pred_region
    _
  $region37: #{tpu_custom_call.1} parent=0 // pred_fallthru
    _

// kernel: tpu_custom_call.1
$region0: #{tpu_custom_call.1}
  #allocation0 [shape = 'u32[]', space=smem, size = 0x4, offset = 0x4, fixed_abs, tag = 'smem constant byte address 0x4 - core index']
  #allocation1 [shape = 'u32[144,128]{1,0:T(1,128)}', space=vmem, size = 0x12000, scoped, tag = 'internal scratch']
  #allocation2 [shape = 'f32[1,1]{1,0:T(1,128)S(1)}', space=vmem, size = 0x200, scoped, tag = 'scoped memory for tpu_custom_call.1']
  %s0 = inlined_call_operand.vmem [shape: bf16[16,32], index: 0, kind: input, shape index: {}]
  %s1 = inlined_call_operand.vmem [shape: bf16[32,64], index: 1, kind: input, shape index: {}]
  %s2 = inlined_call_operand.vmem [shape: f32[1,64], index: 2, kind: input, shape index: {}]
  %s3 = inlined_call_operand.vmem [shape: bf16[64,32], index: 3, kind: input, shape index: {}]
  %s4 = inlined_call_operand.vmem [shape: f32[1,32], index: 4, kind: input, shape index: {}]
  %s5 = inlined_call_operand.vmem [shape: f32[1,32], index: 5, kind: input, shape index: {}]
  %s6 = inlined_call_operand.<no memory space> [shape: f32[1,1], index: 6, kind: input, shape index: {}]
  %s7 = inlined_call_operand.vmem [shape: f32[16,1], index: 7, kind: output, shape index: {}]
  %s8 = sld [smem:[#allocation0]]
  $region38: #{tpu_custom_call.1} parent=0
    _
  %s10 = ssub.s32 1, %s8
  %s11 = scalar_select 0, %s10, %s8
  %v12 = vstv %s6
  %13 = vst [vmem:[#allocation2] sm:$0x1] %v12
  // Predicated region
  $region2: #{tpu_custom_call.1} parent=0 // pred_check
    _
  $region3: #{tpu_custom_call.1} parent=0 // pred_check_branch
    %15 = sbr.rel (0) target = $region5
  $region4: #{tpu_custom_call.1} parent=0 // pred_region
    _
  $region5: #{tpu_custom_call.1} parent=0 // pred_fallthru
    _
  // Predicated region
  $region6: #{tpu_custom_call.1} parent=0 // pred_check
    _
  $region7: #{tpu_custom_call.1} parent=0 // pred_check_branch
    %17 = sbr.rel (0) target = $region9
  $region8: #{tpu_custom_call.1} parent=0 // pred_region
    _
  $region9: #{tpu_custom_call.1} parent=0 // pred_fallthru
    _
  // Predicated region
  $region10: #{tpu_custom_call.1} parent=0 // pred_check
    _
  $region11: #{tpu_custom_call.1} parent=0 // pred_check_branch
    %19 = sbr.rel (0) target = $region13
  $region12: #{tpu_custom_call.1} parent=0 // pred_region
    _
  $region13: #{tpu_custom_call.1} parent=0 // pred_fallthru
    _
  // Predicated region
  $region14: #{tpu_custom_call.1} parent=0 // pred_check
    _
  $region15: #{tpu_custom_call.1} parent=0 // pred_check_branch
    %21 = sbr.rel (0) target = $region17
  $region16: #{tpu_custom_call.1} parent=0 // pred_region
    _
  $region17: #{tpu_custom_call.1} parent=0 // pred_fallthru
    _
  // Predicated region
  $region18: #{tpu_custom_call.1} parent=0 // pred_check
    _
  $region19: #{tpu_custom_call.1} parent=0 // pred_check_branch
    %23 = sbr.rel (0) target = $region21
  $region20: #{tpu_custom_call.1} parent=0 // pred_region
    _
  $region21: #{tpu_custom_call.1} parent=0 // pred_fallthru
    _
  // Predicated region
  $region22: #{tpu_custom_call.1} parent=0 // pred_check
    _
  $region23: #{tpu_custom_call.1} parent=0 // pred_check_branch
    %25 = sbr.rel (0) target = $region25
  $region24: #{tpu_custom_call.1} parent=0 // pred_region
    _
  $region25: #{tpu_custom_call.1} parent=0 // pred_fallthru
    _
  // Predicated region
  $region26: #{tpu_custom_call.1} parent=0 // pred_check
    _
  $region27: #{tpu_custom_call.1} parent=0 // pred_check_branch
    %27 = sbr.rel (0) target = $region29
  $region28: #{tpu_custom_call.1} parent=0 // pred_region
    _
  $region29: #{tpu_custom_call.1} parent=0 // pred_fallthru
    _
  %v29 = vld [vmem:[%s0] sm:$0xf]
  %v30 = vld [vmem:[%s0 + $0x4] sm:$0xf]
  %v31 = vld [vmem:[%s1] sm:$0xf]
  %v32 = vld [vmem:[%s1 + $0x4] sm:$0xf]
  %v33 = vld [vmem:[%s1 + $0x8] sm:$0xf]
  %v34 = vld [vmem:[%s1 + $0xc] sm:$0xf]
  %v35 = vld [vmem:[%s2] sm:$0x1]
  %v37 = vlaneseq
  %v38 = vshrl.u32 %v37, 7
  %v39 = vsub.s32 0, %v38
  %v40 = vrot.slane %v35, %v39
  %v44 = vunpack.c.l.b16 %v29
  %v45 = vunpack.c.l.b16 %v30
  %v46 = vpack.c.b16 %v45, %v44
  %v51 = vunpack.c.l.b16 %v31
  %v52 = vunpack.c.l.b16 %v32
  %v53 = vunpack.c.l.b16 %v33
  %v54 = vunpack.c.l.b16 %v34
  %v55 = vpack.c.b16 %v52, %v51
  %v56 = vpack.c.b16 %v54, %v53
  %vm59 = vcmask 261120
  %v61 = vsel %vm59, %v46, 0
  %63 = vmatprep.subr.bf16.mxu0 0
  %64 = vmatpush1.bf16.msra.mxu0 %v55
  %65 = vmatprep.subr.bf16.mxu0 0
  %66 = vmatpush1.bf16.msra.mxu0 %v56
  %67 = vmatprep.subr.bf16.mxu0 0
  %68 = vmatpush1.bf16.msra.mxu0 0
  %69 = vmatprep.subr.bf16.mxu0 0
  %70 = vmatpush1.bf16.msra.mxu0 0
  %71 = vmatprep.subr.bf16.mxu0 0
  %72 = vmatpush1.bf16.msra.mxu0 0
  %73 = vmatprep.subr.bf16.mxu0 0
  %74 = vmatpush1.bf16.msra.mxu0 0
  %75 = vmatprep.subr.bf16.mxu0 0
  %76 = vmatpush1.bf16.msra.mxu0 0
  %77 = vmatprep.subr.bf16.mxu0 0
  %78 = vmatpush1.bf16.msra.mxu0 0
  %79 = vmatprep.subr.bf16.mxu0 0
  %80 = vmatpush1.bf16.msra.mxu0 0
  %81 = vmatprep.subr.bf16.mxu0 0
  %82 = vmatpush1.bf16.msra.mxu0 0
  %83 = vmatprep.subr.bf16.mxu0 0
  %84 = vmatpush1.bf16.msra.mxu0 0
  %85 = vmatprep.subr.bf16.mxu0 0
  %86 = vmatpush1.bf16.msra.mxu0 0
  %87 = vmatprep.subr.bf16.mxu0 0
  %88 = vmatpush1.bf16.msra.mxu0 0
  %89 = vmatprep.subr.bf16.mxu0 0
  %90 = vmatpush1.bf16.msra.mxu0 0
  %91 = vmatprep.subr.bf16.mxu0 0
  %92 = vmatpush1.bf16.msra.mxu0 0
  %93 = vmatprep.subr.bf16.mxu0 0
  %94 = vmatpush1.bf16.msra.mxu0 0
  %95 = vmatprep.mubr.bf16.mxu0 0
  %96 = vmatmul.mubr.bf16.gmra.mrb[0].mxu0 %v61
  %v97 = vpop.f32.mrb[0].mxu0
  %v98 = vadd.f32 %v40, %v97
  %v99 = vpop.f32.mrb[0].mxu0
  %v100 = vpop.f32.mrb[0].mxu0
  %v101 = vadd.f32 %v40, %v100
  %v102 = vpop.f32.mrb[0].mxu0
  %103 = vdwg.mxu0
  %v104 = vmax.f32 %v98, 0.0
  %v105 = vmax.f32 %v101, 0.0
  %v106 = vpack.c.bf16 %v105, %v104
  %v107 = vld [vmem:[%s3] sm:$0xf]
  %v108 = vld [vmem:[%s3 + $0x4] sm:$0xf]
  %v109 = vld [vmem:[%s3 + $0x8] sm:$0xf]
  %v110 = vld [vmem:[%s3 + $0xc] sm:$0xf]
  %v111 = vld [vmem:[%s3 + $0x10] sm:$0xf]
  %v112 = vld [vmem:[%s3 + $0x14] sm:$0xf]
  %v113 = vld [vmem:[%s3 + $0x18] sm:$0xf]
  %v114 = vld [vmem:[%s3 + $0x1c] sm:$0xf]
  %v115 = vld [vmem:[%s4] sm:$0x1]
  %v117 = vlaneseq
  %v118 = vshrl.u32 %v117, 7
  %v119 = vsub.s32 0, %v118
  %v120 = vrot.slane %v115, %v119
  %v130 = vunpack.c.l.b16 %v107
  %v131 = vunpack.c.l.b16 %v108
  %v132 = vunpack.c.l.b16 %v109
  %v133 = vunpack.c.l.b16 %v110
  %v134 = vunpack.c.l.b16 %v111
  %v135 = vunpack.c.l.b16 %v112
  %v136 = vunpack.c.l.b16 %v113
  %v137 = vunpack.c.l.b16 %v114
  %v138 = vpack.c.b16 %v131, %v130
  %v139 = vpack.c.b16 %v133, %v132
  %v140 = vpack.c.b16 %v135, %v134
  %v141 = vpack.c.b16 %v137, %v136
  %vm146 = vcmask 523264
  %v148 = vsel %vm146, %v106, 0
  %150 = vmatprep.subr.bf16.mxu0 0
  %151 = vmatpush1.bf16.msra.mxu0 %v138
  %152 = vmatprep.subr.bf16.mxu0 0
  %153 = vmatpush1.bf16.msra.mxu0 %v139
  %154 = vmatprep.subr.bf16.mxu0 0
  %155 = vmatpush1.bf16.msra.mxu0 %v140
  %156 = vmatprep.subr.bf16.mxu0 0
  %157 = vmatpush1.bf16.msra.mxu0 %v141
  %158 = vmatprep.subr.bf16.mxu0 0
  %159 = vmatpush1.bf16.msra.mxu0 0
  %160 = vmatprep.subr.bf16.mxu0 0
  %161 = vmatpush1.bf16.msra.mxu0 0
  %162 = vmatprep.subr.bf16.mxu0 0
  %163 = vmatpush1.bf16.msra.mxu0 0
  %164 = vmatprep.subr.bf16.mxu0 0
  %165 = vmatpush1.bf16.msra.mxu0 0
  %166 = vmatprep.subr.bf16.mxu0 0
  %167 = vmatpush1.bf16.msra.mxu0 0
  %168 = vmatprep.subr.bf16.mxu0 0
  %169 = vmatpush1.bf16.msra.mxu0 0
  %170 = vmatprep.subr.bf16.mxu0 0
  %171 = vmatpush1.bf16.msra.mxu0 0
  %172 = vmatprep.subr.bf16.mxu0 0
  %173 = vmatpush1.bf16.msra.mxu0 0
  %174 = vmatprep.subr.bf16.mxu0 0
  %175 = vmatpush1.bf16.msra.mxu0 0
  %176 = vmatprep.subr.bf16.mxu0 0
  %177 = vmatpush1.bf16.msra.mxu0 0
  %178 = vmatprep.subr.bf16.mxu0 0
  %179 = vmatpush1.bf16.msra.mxu0 0
  %180 = vmatprep.subr.bf16.mxu0 0
  %181 = vmatpush1.bf16.msra.mxu0 0
  %182 = vmatprep.mubr.bf16.mxu0 0
  %183 = vmatmul.mubr.bf16.gmra.mrb[0].mxu0 %v148
  %v184 = vpop.f32.mrb[0].mxu0
  %v185 = vadd.f32 %v120, %v184
  %v186 = vpop.f32.mrb[0].mxu0
  %v187 = vpop.f32.mrb[0].mxu0
  %v188 = vadd.f32 %v120, %v187
  %v189 = vpop.f32.mrb[0].mxu0
  %190 = vdwg.mxu0
  %v191 = vmax.f32 %v185, 0.0
  %v192 = vmax.f32 %v188, 0.0
  %v193 = vld [vmem:[%s5] sm:$0x1]
  %v195 = vlaneseq
  %v196 = vshrl.u32 %v195, 7
  %v197 = vsub.s32 0, %v196
  %v198 = vrot.slane %v193, %v197
  %v200 = vmul.f32 %v191, %v198
  %v201 = vmul.f32 %v192, %v198
  %v202 = vsel %vm59, %v200, 0.0
  %203 = vadd.xlane.f32.xlu0 %v202
  %v204 = vpop.xlane.xlu0 %203
  %v205 = vsel %vm59, %v201, 0.0
  %206 = vadd.xlane.f32.xlu0 %v205
  %v207 = vpop.xlane.xlu0 %206
  %v208 = vld [vmem:[#allocation2] sm:$0x1]
  %v210 = vlaneseq
  %v211 = vshrl.u32 %v210, 7
  %v212 = vsub.s32 0, %v211
  %v213 = vrot.slane %v208, %v212
  %v215 = vadd.f32 %v204, %v213
  %v216 = vadd.f32 %v207, %v213
  %v217 = vxor.u32 %v215, 2147483648
  %v218 = vxor.u32 %v216, 2147483648
  %v219 = vmul.f32 %v217, 1.442695
  %v220 = vpow.pop %v219
  %v221 = vmul.f32 %v218, 1.442695
  %v222 = vpow.pop %v221
  %v223 = vadd.f32 %v220, 1.0
  %v224 = vadd.f32 %v222, 1.0
  %v225 = vrcp.pop %v223
  %v226 = vmul.f32 1.0, %v225
  %v227 = vrcp.pop %v224
  %v228 = vmul.f32 1.0, %v227
  %vm229 = vcmask 7168
  %230 = vst.msk [vmem:[%s7] sm:$0xff] %vm229, %v226
  %231 = vst.msk [vmem:[%s7 + $0x8] sm:$0xff] %vm229, %v228
  // Predicated region
  $region30: #{tpu_custom_call.1} parent=0 // pred_check
    _
  $region31: #{tpu_custom_call.1} parent=0 // pred_check_branch
    %233 = sbr.rel (0) target = $region33
  $region32: #{tpu_custom_call.1} parent=0 // pred_region
    _
  $region33: #{tpu_custom_call.1} parent=0 // pred_fallthru
    _
  // Predicated region
  $region34: #{tpu_custom_call.1} parent=0 // pred_check
    _
  $region35: #{tpu_custom_call.1} parent=0 // pred_check_branch
    %235 = sbr.rel (0) target = $region37
  $region36: #{tpu_custom_call.1} parent=0 // pred_region
    _
  $region37: #{tpu_custom_call.1} parent=0 // pred_fallthru
    _

</llo_original>
